<compile_context>
chip_gen: v7x
topology: tpu7x:2x2x1
jax: 0.10.0
libtpu: 0.0.40
codegen_flags: <defaults>
</compile_context>

<pallas_src>
import functools

import jax
import jax.numpy as jnp
from jax.experimental import pallas as pl
from jax.experimental.pallas import tpu as pltpu

BN_EPS = 1e-5
LANE = 128
SUBLANE = 8


def _round_up(a, m):
    return ((a + m - 1) // m) * m


def head_kernel(x_ref, w1_ref, b1_ref, w2_ref, b2_ref, out_ref, acc_ref, *, inv_hw):
    # grid = (batch_tiles, hw_chunks); axis 1 is the streamed spatial reduction.
    j = pl.program_id(1)

    @pl.when(j == 0)
    def _():
        acc_ref[...] = jnp.zeros_like(acc_ref)

    # Only this HW chunk is ever live in f32: (TB, HW_CHUNK, C) -> (TB, C).
    # C sits on lanes, so the spatial sum is a cheap sublane reduction and the
    # accumulator comes out contraction-dim lane-major for the MXU.
    acc_ref[...] += jnp.sum(x_ref[...].astype(jnp.float32), axis=1)

    @pl.when(j == pl.num_programs(1) - 1)
    def _():
        pooled = (acc_ref[...] * inv_hw).astype(jnp.bfloat16)            # (TB, C)
        # fc1 with eval-mode BatchNorm folded in; Dropout is identity.
        h = jnp.dot(pooled, w1_ref[...],
                    preferred_element_type=jnp.float32) + b1_ref[...]    # (TB, H1) f32
        h = h.astype(jnp.bfloat16)
        # embedding head (output lane-padded to a multiple of 128 by wrapper)
        out_ref[...] = (jnp.dot(h, w2_ref[...],
                                preferred_element_type=jnp.float32)
                        + b2_ref[...]).astype(out_ref.dtype)


def feature_extractor_head(x_nchw, params, *, block_b=128, hw_chunk=None,
                           stream_dtype=jnp.bfloat16):
    """Head of FeatureExtractor. x_nchw: (B, C, H, W) backbone feature map.
    Returns (B, embedding_size) float32."""
    B, C, H, W = x_nchw.shape
    HW = H * W

    w1, b1, gamma, beta, rmean, rvar, w2, b2 = params
    H1 = w1.shape[1]
    E = w2.shape[1]

    # Fold eval-mode BatchNorm into fc1 (done once, outside the kernel).
    # Weights go to bf16 (native MXU rate, half the VMEM); biases stay f32.
    s = gamma * jax.lax.rsqrt(rvar + BN_EPS)                      # (1, H1)
    w1f = (w1 * s).astype(jnp.bfloat16)                           # (C, H1)
    b1f = ((b1 - rmean) * s + beta).astype(jnp.float32)           # (1, H1)

    # Lane-dense output: pad embedding dim up to a multiple of 128.
    e_pad = max(LANE, _round_up(E, LANE))
    w2p = w2.astype(jnp.bfloat16)
    b2p = b2.astype(jnp.float32)
    if e_pad != E:
        w2p = jnp.pad(w2p, ((0, 0), (0, e_pad - E)))
        b2p = jnp.pad(b2p, ((0, 0), (0, e_pad - E)))

    # Cast to bf16 BEFORE the layout change: halves wrapper-side HBM traffic.
    # TODO(synk): ideally the backbone emits NHWC so this transpose is free.
    x = x_nchw.astype(stream_dtype).transpose(0, 2, 3, 1).reshape(B, HW, C)
    itemsize = jnp.dtype(stream_dtype).itemsize

    # Batch tile: sublane multiple, and >= 2 grid steps whenever B allows so
    # v7x's two TensorCores both get work on the "parallel" axis.
    tb = min(block_b, max(SUBLANE, _round_up(pl.cdiv(B, 2), SUBLANE)))
    tb = min(tb, _round_up(B, SUBLANE))
    b_pad = _round_up(B, tb)

    # HW chunk: sublane multiple, sized so one streamed x buffer is ~<= 4 MiB.
    if hw_chunk is None:
        row_bytes = max(1, tb * C * itemsize)
        hw_chunk = max(SUBLANE, (((4 << 20) // row_bytes) // SUBLANE) * SUBLANE)
    hw_chunk = max(SUBLANE, _round_up(hw_chunk, SUBLANE))
    hw_chunk = min(hw_chunk, _round_up(HW, SUBLANE))
    hw_pad = _round_up(HW, hw_chunk)

    pad_b, pad_hw = b_pad - B, hw_pad - HW
    if pad_b or pad_hw:
        # Zero padding is safe: we accumulate a sum and divide by the true HW.
        x = jnp.pad(x, ((0, pad_b), (0, pad_hw), (0, 0)))

    grid = (b_pad // tb, hw_pad // hw_chunk)

    # Honest VMEM budget: 2 pipeline buffers for EVERY input (weights included,
    # since the default pipeline double-buffers even constant-index blocks),
    # 2 output buffers, the f32 pooled-sum scratch, plus headroom.
    x_bytes = 2 * tb * hw_chunk * C * itemsize
    w_bytes = 2 * (C * H1 * 2 + H1 * 4 + H1 * e_pad * 2 + e_pad * 4)
    o_bytes = 2 * tb * e_pad * 4
    acc_bytes = tb * C * 4
    footprint = x_bytes + w_bytes + o_bytes + acc_bytes + (4 << 20)
    try:
        phys_vmem = int(pltpu.get_tpu_info().vmem_capacity_bytes)
    except Exception:
        phys_vmem = 64 << 20        # v7x-safe fallback
    vmem_limit = int(min(max(footprint, 16 << 20), int(phys_vmem * 0.9)))

    kernel = functools.partial(head_kernel, inv_hw=1.0 / HW)

    out = pl.pallas_call(
        kernel,
        out_shape=jax.ShapeDtypeStruct((b_pad, e_pad), jnp.float32),
        grid=grid,
        in_specs=[
            pl.BlockSpec((tb, hw_chunk, C), lambda i, j: (i, j, 0)),  # x (streamed)
            pl.BlockSpec((C, H1), lambda i, j: (0, 0)),               # w1 (BN folded, bf16)
            pl.BlockSpec((1, H1), lambda i, j: (0, 0)),               # b1 (BN folded, f32)
            pl.BlockSpec((H1, e_pad), lambda i, j: (0, 0)),           # w2 (bf16, lane-padded)
            pl.BlockSpec((1, e_pad), lambda i, j: (0, 0)),            # b2 (f32, lane-padded)
        ],
        out_specs=pl.BlockSpec((tb, e_pad), lambda i, j: (i, 0)),
        scratch_shapes=[pltpu.VMEM((tb, C), jnp.float32)],            # pooled-sum acc
        compiler_params=pltpu.CompilerParams(
            dimension_semantics=("parallel", "arbitrary"),
            vmem_limit_bytes=vmem_limit,
        ),
    )(x, w1f, b1f, w2p, b2p)

    return out[:B, :E]


def init_params(key, num_features, hidden, embedding_size):
    k1, k2, k3, k4, k5, k6 = jax.random.split(key, 6)
    scale1 = 1.0 / jnp.sqrt(num_features)
    scale2 = 1.0 / jnp.sqrt(hidden)
    w1 = jax.random.uniform(k1, (num_features, hidden), jnp.float32, -scale1, scale1)
    b1 = jax.random.uniform(k2, (1, hidden), jnp.float32, -scale1, scale1)
    gamma = jnp.ones((1, hidden), jnp.float32)
    beta = jnp.zeros((1, hidden), jnp.float32)
    rmean = jax.random.normal(k3, (1, hidden), jnp.float32) * 0.1
    rvar = jnp.ones((1, hidden), jnp.float32) + jax.random.uniform(k4, (1, hidden)) * 0.1
    w2 = jax.random.uniform(k5, (hidden, embedding_size), jnp.float32, -scale2, scale2)
    b2 = jax.random.uniform(k6, (1, embedding_size), jnp.float32, -scale2, scale2)
    return (w1, b1, gamma, beta, rmean, rvar, w2, b2)


def reference(x_nchw, params):
    """Pure-JAX reference (eval-mode BN, identity dropout) in f32, unfused."""
    w1, b1, gamma, beta, rmean, rvar, w2, b2 = params
    pooled = jnp.mean(x_nchw, axis=(2, 3))
    h = jnp.dot(pooled, w1, precision=jax.lax.Precision.HIGHEST) + b1
    h = (h - rmean) / jnp.sqrt(rvar + BN_EPS) * gamma + beta
    return jnp.dot(h, w2, precision=jax.lax.Precision.HIGHEST) + b2


if __name__ == "__main__":
    # Small, module-consistent shapes: backbone feature map (B, num_features, h, w)
    B, C, H, W = 16, 128, 8, 8          # num_features scaled down 1792 -> 128
    HIDDEN, EMB = 128, 64               # fc1 512 -> 128, embedding 512 -> 64

    key = jax.random.PRNGKey(0)
    kx, kp = jax.random.split(key)
    x = jax.random.normal(kx, (B, C, H, W), jnp.float32)
    params = init_params(kp, C, HIDDEN, EMB)

    # block_b=8, hw_chunk=16 so the demo exercises both grid axes
    # (2 batch tiles x 4 streamed HW chunks).
    out = feature_extractor_head(x, params, block_b=8, hw_chunk=16)
    out = jax.block_until_ready(out)

    # Reference on the same bf16-cast input; the kernel additionally holds
    # the folded weights and intermediates in bf16 (f32 accumulation), so
    # allow ~1e-2 absolute slack.
    x_q = x.astype(jnp.bfloat16).astype(jnp.float32)
    ref = reference(x_q, params)

    assert out.shape == (B, EMB)
    err = float(jnp.max(jnp.abs(out - ref)))
    assert err < 1e-2, f"mismatch vs reference (max err {err})"

    print("KERNEL_OK")
</pallas_src>

<mosaic_0001>
module attributes {stable_mosaic.version = 11 : i64} {
  func.func @head_kernel(%arg0: i32, %arg1: i32, %arg2: memref<8x16x128xbf16, #tpu.memory_space<vmem>>, %arg3: memref<128x128xbf16, #tpu.memory_space<vmem>>, %arg4: memref<1x128xf32, #tpu.memory_space<vmem>>, %arg5: memref<128x128xbf16, #tpu.memory_space<vmem>>, %arg6: memref<1x128xf32, #tpu.memory_space<vmem>>, %arg7: memref<8x128xf32, #tpu.memory_space<vmem>>, %arg8: memref<8x128xf32, #tpu.memory_space<vmem>>) attributes {dimension_semantics = [#tpu.dimension_semantics<parallel>, #tpu.dimension_semantics<arbitrary>], iteration_bounds = array<i64: 2, 4>, scalar_prefetch = 0 : i64, scratch_operands = 1 : i64, tpu.core_type = #tpu.core_type<tc>, window_params = [{transform_indices = @transform_0, window_bounds = array<i64: 8, 16, 128>}, {pipeline_mode = #tpu.pipeline_mode<synchronous>, transform_indices = @transform_1, window_bounds = array<i64: 128, 128>}, {pipeline_mode = #tpu.pipeline_mode<synchronous>, transform_indices = @transform_2, window_bounds = array<i64: 1, 128>}, {pipeline_mode = #tpu.pipeline_mode<synchronous>, transform_indices = @transform_3, window_bounds = array<i64: 128, 128>}, {pipeline_mode = #tpu.pipeline_mode<synchronous>, transform_indices = @transform_4, window_bounds = array<i64: 1, 128>}, {transform_indices = @transform_5, window_bounds = array<i64: 8, 128>}]} {
    %c0_i32 = arith.constant 0 : i32
    %0 = arith.cmpi eq, %arg1, %c0_i32 : i32
    %1 = arith.extui %0 : i1 to i32
    %c0_i32_0 = arith.constant 0 : i32
    %2 = arith.cmpi ne, %1, %c0_i32_0 : i32
    scf.if %2 {
      %cst_8 = arith.constant 0.000000e+00 : f32
      %12 = vector.broadcast %cst_8 : f32 to vector<8x128xf32>
      %c0_9 = arith.constant 0 : index
      %c0_10 = arith.constant 0 : index
      %13 = vector.load %arg8[%c0_9, %c0_10] : memref<8x128xf32, #tpu.memory_space<vmem>>, vector<8x128xf32>
      tpu.vector_store %arg8[%c0_9, %c0_10], %12 {strides = array<i32>} : memref<8x128xf32, #tpu.memory_space<vmem>>, vector<8x128xf32>,
    } else {
    }
    %c0 = arith.constant 0 : index
    %c0_1 = arith.constant 0 : index
    %3 = vector.load %arg8[%c0, %c0_1] : memref<8x128xf32, #tpu.memory_space<vmem>>, vector<8x128xf32>
    %c0_2 = arith.constant 0 : index
    %c0_3 = arith.constant 0 : index
    %c0_4 = arith.constant 0 : index
    %4 = vector.load %arg2[%c0_2, %c0_3, %c0_4] : memref<8x16x128xbf16, #tpu.memory_space<vmem>>, vector<8x16x128xbf16>
    %5 = arith.extf %4 : vector<8x16x128xbf16> to vector<8x16x128xf32>
    %cst = arith.constant dense<0.000000e+00> : vector<8x128xf32>
    %6 = vector.multi_reduction <add>, %5, %cst [1] : vector<8x16x128xf32> to vector<8x128xf32>
    %7 = arith.addf %3, %6 : vector<8x128xf32>
    %c0_5 = arith.constant 0 : index
    %c0_6 = arith.constant 0 : index
    %8 = vector.load %arg8[%c0_5, %c0_6] : memref<8x128xf32, #tpu.memory_space<vmem>>, vector<8x128xf32>
    tpu.vector_store %arg8[%c0_5, %c0_6], %7 {strides = array<i32>} : memref<8x128xf32, #tpu.memory_space<vmem>>, vector<8x128xf32>,
    %c3_i32 = arith.constant 3 : i32
    %9 = arith.cmpi eq, %arg1, %c3_i32 : i32
    %10 = arith.extui %9 : i1 to i32
    %c0_i32_7 = arith.constant 0 : i32
    %11 = arith.cmpi ne, %10, %c0_i32_7 : i32
    scf.if %11 {
      %c0_8 = arith.constant 0 : index
      %c0_9 = arith.constant 0 : index
      %12 = vector.load %arg8[%c0_8, %c0_9] : memref<8x128xf32, #tpu.memory_space<vmem>>, vector<8x128xf32>
      %cst_10 = arith.constant 1.562500e-02 : f32
      %13 = vector.broadcast %cst_10 : f32 to vector<8x128xf32>
      %14 = arith.mulf %12, %13 : vector<8x128xf32>
      %15 = arith.truncf %14 : vector<8x128xf32> to vector<8x128xbf16>
      %c0_11 = arith.constant 0 : index
      %c0_12 = arith.constant 0 : index
      %16 = vector.load %arg3[%c0_11, %c0_12] : memref<128x128xbf16, #tpu.memory_space<vmem>>, vector<128x128xbf16>
      %cst_13 = arith.constant dense<0.000000e+00> : vector<8x128xf32>
      %17 = tpu.matmul %15, %16, %cst_13 {dimension_numbers = #tpu.dot_dimension_numbers<[1], [0], [0], [1], [0, 0, 1, 1], [], []>} : vector<8x128xbf16>, vector<128x128xbf16>, vector<8x128xf32> -> vector<8x128xf32>
      %c0_14 = arith.constant 0 : index
      %c0_15 = arith.constant 0 : index
      %18 = vector.load %arg4[%c0_14, %c0_15] : memref<1x128xf32, #tpu.memory_space<vmem>>, vector<1x128xf32>
      %19 = vector.broadcast %18 : vector<1x128xf32> to vector<8x128xf32>
      %20 = arith.addf %17, %19 : vector<8x128xf32>
      %21 = arith.truncf %20 : vector<8x128xf32> to vector<8x128xbf16>
      %c0_16 = arith.constant 0 : index
      %c0_17 = arith.constant 0 : index
      %22 = vector.load %arg5[%c0_16, %c0_17] : memref<128x128xbf16, #tpu.memory_space<vmem>>, vector<128x128xbf16>
      %cst_18 = arith.constant dense<0.000000e+00> : vector<8x128xf32>
      %23 = tpu.matmul %21, %22, %cst_18 {dimension_numbers = #tpu.dot_dimension_numbers<[1], [0], [0], [1], [0, 0, 1, 1], [], []>} : vector<8x128xbf16>, vector<128x128xbf16>, vector<8x128xf32> -> vector<8x128xf32>
      %c0_19 = arith.constant 0 : index
      %c0_20 = arith.constant 0 : index
      %24 = vector.load %arg6[%c0_19, %c0_20] : memref<1x128xf32, #tpu.memory_space<vmem>>, vector<1x128xf32>
      %25 = vector.broadcast %24 : vector<1x128xf32> to vector<8x128xf32>
      %26 = arith.addf %23, %25 : vector<8x128xf32>
      %c0_21 = arith.constant 0 : index
      %c0_22 = arith.constant 0 : index
      %27 = vector.load %arg7[%c0_21, %c0_22] : memref<8x128xf32, #tpu.memory_space<vmem>>, vector<8x128xf32>
      tpu.vector_store %arg7[%c0_21, %c0_22], %26 {strides = array<i32>} : memref<8x128xf32, #tpu.memory_space<vmem>>, vector<8x128xf32>,
    } else {
    }
    return
  }
  func.func @transform_0(%arg0: i32, %arg1: i32) -> (i32, i32, i32) {
    %c0_i32 = arith.constant 0 : i32
    %c0_i32_0 = arith.constant 0 : i32
    return %arg0, %arg1, %c0_i32 : i32, i32, i32
  }
  func.func @transform_1(%arg0: i32, %arg1: i32) -> (i32, i32) {
    %c0_i32 = arith.constant 0 : i32
    %c0_i32_0 = arith.constant 0 : i32
    %c0_i32_1 = arith.constant 0 : i32
    return %c0_i32, %c0_i32_0 : i32, i32
  }
  func.func @transform_2(%arg0: i32, %arg1: i32) -> (i32, i32) {
    %c0_i32 = arith.constant 0 : i32
    %c0_i32_0 = arith.constant 0 : i32
    %c0_i32_1 = arith.constant 0 : i32
    return %c0_i32, %c0_i32_0 : i32, i32
  }
  func.func @transform_3(%arg0: i32, %arg1: i32) -> (i32, i32) {
    %c0_i32 = arith.constant 0 : i32
    %c0_i32_0 = arith.constant 0 : i32
    %c0_i32_1 = arith.constant 0 : i32
    return %c0_i32, %c0_i32_0 : i32, i32
  }
  func.func @transform_4(%arg0: i32, %arg1: i32) -> (i32, i32) {
    %c0_i32 = arith.constant 0 : i32
    %c0_i32_0 = arith.constant 0 : i32
    %c0_i32_1 = arith.constant 0 : i32
    return %c0_i32, %c0_i32_0 : i32, i32
  }
  func.func @transform_5(%arg0: i32, %arg1: i32) -> (i32, i32) {
    %c0_i32 = arith.constant 0 : i32
    %c0_i32_0 = arith.constant 0 : i32
    return %arg0, %c0_i32 : i32, i32
  }
}

</mosaic_0001>

<llo_original>
// kernel: tpu_custom_call.1
$region0: #{tpu_custom_call.1}
  #allocation0 [shape = 'u32[]', space=smem, size = 0x4, offset = 0x4, fixed_abs, tag = 'smem constant byte address 0x4 - core index']
  #allocation1 [shape = 'u32[144,128]{1,0:T(1,128)}', space=vmem, size = 0x12000, scoped, tag = 'internal scratch']
  #allocation2 [shape = 'f32[8,128]{1,0:T(8,128)}', space=vmem, size = 0x1000, scoped, tag = 'scratch operand']
  #allocation10 [shape = 's32[]', space=sflag, size = 0x4, offset = 0, fixed_abs, tag = 'sflag constant byte address 0x0 - dummy sync flag']
  %s0 = inlined_call_operand.hbm [shape: bf16[16,64,128], index: 0, kind: input, shape index: {}]
  %s1 = inlined_call_operand.hbm [shape: bf16[128,128], index: 1, kind: input, shape index: {}]
  %s2 = inlined_call_operand.vmem [shape: f32[1,128], index: 2, kind: input, shape index: {}]
  %s3 = inlined_call_operand.hbm [shape: bf16[128,128], index: 3, kind: input, shape index: {}]
  %s4 = inlined_call_operand.vmem [shape: f32[1,128], index: 4, kind: input, shape index: {}]
  %s5 = inlined_call_operand.hbm [shape: f32[16,128], index: 5, kind: output, shape index: {}]
  %s6 = sld [smem:[#allocation0]]
  $region73: #{tpu_custom_call.1} parent=0
    _
  %s8 = ssub.s32 1, %s6
  %s9 = scalar_select 0, %s8, %s6
  $region1: #{tpu_custom_call.1} parent=0
    #allocation3 [shape = 'u8[65536]{0}', space=vmem, size = 0x10000, scoped, tag = 'input window, operand 0']
    #allocation4 [shape = 's32[2]{0}', space=sflag, size = 0x8, scoped, tag = 'scoped memory for tpu_custom_call.1']
    #allocation5 [shape = 's32[2]{0}', space=sflag, size = 0x8, scoped, tag = 'scoped memory for tpu_custom_call.1']
    #allocation6 [shape = 'u8[32768]{0}', space=vmem, size = 0x8000, scoped, tag = 'input window, operand 1, single buffered']
    #allocation7 [shape = 's32[1]{0}', space=sflag, size = 0x4, scoped, tag = 'scoped memory for tpu_custom_call.1']
    #allocation8 [shape = 'u8[32768]{0}', space=vmem, size = 0x8000, scoped, tag = 'input window, operand 3, single buffered']
    #allocation9 [shape = 'u8[8192]{0}', space=vmem, size = 0x2000, scoped, tag = 'output window, operand 0']
    %10 = vsyncpa [#allocation4], 0
    %s11 = scalar_lea.sflag [#allocation4], 1
    %12 = vsyncpa %s11, 0
    %13 = vsyncpa [#allocation7], 0
    %14 = vsyncpa [#allocation5], 0
    %s15 = scalar_lea.sflag [#allocation5], 1
    %16 = vsyncpa %s15, 0
    loop: start=0, step=1, limit=10
    $region2: #{tpu_custom_call.1} parent=1 // loop_pre_header
      _
    $region3: #{tpu_custom_call.1} parent=1 // loop_header
      %s18 = sphi 0, %s22
      %p19 = scmp.ge.s32.totalorder %s18, 10
      %s25 = sphi 0, %s37
      %s26 = sphi 0, %s33
      %s27 = sphi 0, %s25
      %s28 = sphi 0, %s26
      %s29 = sphi 0, %s27
      %s30 = sphi 0, %s28
      %s42 = sphi 0, %s44
      %s45 = sphi 0, %s42
      %s46 = sphi 0, %s45
      %s62 = sphi 0, %s46
      %s66 = sphi 0, %s66
      %s68 = sphi 0, %s66
      %s69 = sphi 0, %s68
      %s83 = sphi 0, %s69
      %s87 = sphi 0, %s87
      %s89 = sphi 0, %s87
      %s90 = sphi 0, %s89
      %s104 = sphi 0, %s90
      %s108 = sphi 0, %s108
      %s110 = sphi 0, %s108
      %s111 = sphi 0, %s110
      %s125 = sphi 0, %s111
      %s129 = sphi 0, %s129
      %s131 = sphi 0, %s129
      %s132 = sphi 0, %s131
      %s146 = sphi 0, %s132
      %s152 = sphi 0, %s154
      %s155 = sphi 0, %s152
      %s156 = sphi 0, %s155
      %s172 = sphi 0, %s156
    $region4: #{tpu_custom_call.1} parent=1 // loop_header_branch
      %21 = sbr.rel (%p19) target = $region8
    $region5: #{tpu_custom_call.1} parent=1 // loop_body
      %s23 = ssub.s32 %s18, 1
      %s24 = ssub.s32 %s18, 2
      %s31 = sadd.s32 1, %s26
      %p32 = scmp.ge.s32.totalorder %s31, 4
      %s33 = scalar_select %p32, 0, %s31
      %s34 = sadd.s32 1, %s25
      %s35 = scalar_select %p32, %s34, %s25
      %p36 = scmp.ge.s32.totalorder %s35, 2
      %s37 = scalar_select %p36, 0, %s35
      %s38 = ssub.s32 %s25, %s37
      %s39 = ssub.s32 %s26, %s33
      %s40 = sor.u32 %s38, %s39
      %p41 = scmp.eq.s32.totalorder %s40, 0
      %s43 = sadd.s32 %s42, 1
      %s44 = scalar_select %p41, %s42, %s43
      %p47 = pneg %p41
      %p48 = scmp.eq.s32.totalorder %s18, 7
      %p49 = por %p47, %p48
      %p50 = scmp.ne.s32.totalorder %s42, %s45
      %p51 = scmp.eq.s32.totalorder %s18, 0
      %p52 = por %p50, %p51
      %p53 = scmp.ne.s32.totalorder %s42, %s45
      %p54 = scmp.eq.s32.totalorder %s23, 7
      %p55 = por %p53, %p54
      %p56 = scmp.ne.s32.totalorder %s45, %s46
      %p57 = scmp.eq.s32.totalorder %s23, 0
      %p58 = por %p56, %p57
      %p59 = scmp.ne.s32.totalorder %s45, %s46
      %p60 = scmp.eq.s32.totalorder %s24, 7
      %p61 = por %p59, %p60
      %p63 = scmp.ne.s32.totalorder %s46, %s62
      %p64 = scmp.eq.s32.totalorder %s24, 0
      %p65 = por %p63, %p64
      %s67 = sadd.s32 %s66, 1
      %p70 = scmp.eq.s32.totalorder %s18, 7
      %p71 = scmp.ne.s32.totalorder %s66, %s68
      %p72 = scmp.eq.s32.totalorder %s18, 0
      %p73 = por %p71, %p72
      %p74 = scmp.ne.s32.totalorder %s66, %s68
      %p75 = scmp.eq.s32.totalorder %s23, 7
      %p76 = por %p74, %p75
      %p77 = scmp.ne.s32.totalorder %s68, %s69
      %p78 = scmp.eq.s32.totalorder %s23, 0
      %p79 = por %p77, %p78
      %p80 = scmp.ne.s32.totalorder %s68, %s69
      %p81 = scmp.eq.s32.totalorder %s24, 7
      %p82 = por %p80, %p81
      %p84 = scmp.ne.s32.totalorder %s69, %s83
      %p85 = scmp.eq.s32.totalorder %s24, 0
      %p86 = por %p84, %p85
      %s88 = sadd.s32 %s87, 1
      %p91 = scmp.eq.s32.totalorder %s18, 7
      %p92 = scmp.ne.s32.totalorder %s87, %s89
      %p93 = scmp.eq.s32.totalorder %s18, 0
      %p94 = por %p92, %p93
      %p95 = scmp.ne.s32.totalorder %s87, %s89
      %p96 = scmp.eq.s32.totalorder %s23, 7
      %p97 = por %p95, %p96
      %p98 = scmp.ne.s32.totalorder %s89, %s90
      %p99 = scmp.eq.s32.totalorder %s23, 0
      %p100 = por %p98, %p99
      %p101 = scmp.ne.s32.totalorder %s89, %s90
      %p102 = scmp.eq.s32.totalorder %s24, 7
      %p103 = por %p101, %p102
      %p105 = scmp.ne.s32.totalorder %s90, %s104
      %p106 = scmp.eq.s32.totalorder %s24, 0
      %p107 = por %p105, %p106
      %s109 = sadd.s32 %s108, 1
      %p112 = scmp.eq.s32.totalorder %s18, 7
      %p113 = scmp.ne.s32.totalorder %s108, %s110
      %p114 = scmp.eq.s32.totalorder %s18, 0
      %p115 = por %p113, %p114
      %p116 = scmp.ne.s32.totalorder %s108, %s110
      %p117 = scmp.eq.s32.totalorder %s23, 7
      %p118 = por %p116, %p117
      %p119 = scmp.ne.s32.totalorder %s110, %s111
      %p120 = scmp.eq.s32.totalorder %s23, 0
      %p121 = por %p119, %p120
      %p122 = scmp.ne.s32.totalorder %s110, %s111
      %p123 = scmp.eq.s32.totalorder %s24, 7
      %p124 = por %p122, %p123
      %p126 = scmp.ne.s32.totalorder %s111, %s125
      %p127 = scmp.eq.s32.totalorder %s24, 0
      %p128 = por %p126, %p127
      %s130 = sadd.s32 %s129, 1
      %p133 = scmp.eq.s32.totalorder %s18, 7
      %p134 = scmp.ne.s32.totalorder %s129, %s131
      %p135 = scmp.eq.s32.totalorder %s18, 0
      %p136 = por %p134, %p135
      %p137 = scmp.ne.s32.totalorder %s129, %s131
      %p138 = scmp.eq.s32.totalorder %s23, 7
      %p139 = por %p137, %p138
      %p140 = scmp.ne.s32.totalorder %s131, %s132
      %p141 = scmp.eq.s32.totalorder %s23, 0
      %p142 = por %p140, %p141
      %p143 = scmp.ne.s32.totalorder %s131, %s132
      %p144 = scmp.eq.s32.totalorder %s24, 7
      %p145 = por %p143, %p144
      %p147 = scmp.ne.s32.totalorder %s132, %s146
      %p148 = scmp.eq.s32.totalorder %s24, 0
      %p149 = por %p147, %p148
      %s150 = ssub.s32 %s25, %s37
      %p151 = scmp.eq.s32.totalorder %s150, 0
      %s153 = sadd.s32 %s152, 1
      %s154 = scalar_select %p151, %s152, %s153
      %p157 = pneg %p151
      %p158 = scmp.eq.s32.totalorder %s18, 7
      %p159 = por %p157, %p158
      %p160 = scmp.ne.s32.totalorder %s152, %s155
      %p161 = scmp.eq.s32.totalorder %s18, 0
      %p162 = por %p160, %p161
      %p163 = scmp.ne.s32.totalorder %s152, %s155
      %p164 = scmp.eq.s32.totalorder %s23, 7
      %p165 = por %p163, %p164
      %p166 = scmp.ne.s32.totalorder %s155, %s156
      %p167 = scmp.eq.s32.totalorder %s23, 0
      %p168 = por %p166, %p167
      %p169 = scmp.ne.s32.totalorder %s155, %s156
      %p170 = scmp.eq.s32.totalorder %s24, 7
      %p171 = por %p169, %p170
      %p173 = scmp.ne.s32.totalorder %s156, %s172
      %p174 = scmp.eq.s32.totalorder %s24, 0
      %p175 = por %p173, %p174
      %p176 = scmp.le.s32.totalorder 1, %s18
      %p177 = scmp.lt.s32.totalorder %s18, 9
      %p178 = pnand %p176, %p177
      %p179 = pneg %p178
      // Predicated region
      $region9: #{tpu_custom_call.1} parent=5 // pred_check
        _
      $region10: #{tpu_custom_call.1} parent=5 // pred_check_branch
        %181 = sbr.rel (%p178) target = $region12
      $region11: #{tpu_custom_call.1} parent=5 // pred_region
        %s182 = ssub.s32 %s18, 1
        // Predicated region
        $region13: #{tpu_custom_call.1} parent=11 // pred_check
          %p183 = pneg %p79
        $region14: #{tpu_custom_call.1} parent=11 // pred_check_branch
          %185 = sbr.rel (%p183) target = $region16
        $region15: #{tpu_custom_call.1} parent=11 // pred_region
          %s187 = ssub.s32 1024, 1024
          %188 = vsyncadd [#allocation7], %s187
          %s189 = sshll.u32 [#allocation6], 4
          %s190 = int_to_ptr.vmem [resolvable:$true] %s189
          %195 = dma.hbm_to_vmem [thread:$0]  %s1, 1024, %s190, [#allocation7], 64, 64, 4
        $region16: #{tpu_custom_call.1} parent=11 // pred_fallthru
          _
        // Predicated region
        $region17: #{tpu_custom_call.1} parent=11 // pred_check
          %p196 = pneg %p100
        $region18: #{tpu_custom_call.1} parent=11 // pred_check_branch
          %198 = sbr.rel (%p196) target = $region20
        $region19: #{tpu_custom_call.1} parent=11 // pred_region
          _
        $region20: #{tpu_custom_call.1} parent=11 // pred_fallthru
          _
        // Predicated region
        $region21: #{tpu_custom_call.1} parent=11 // pred_check
          %p199 = pneg %p121
        $region22: #{tpu_custom_call.1} parent=11 // pred_check_branch
          %201 = sbr.rel (%p199) target = $region24
        $region23: #{tpu_custom_call.1} parent=11 // pred_region
          %s203 = ssub.s32 1024, 1024
          %204 = vsyncadd [#allocation7], %s203
          %s205 = sshll.u32 [#allocation8], 4
          %s206 = int_to_ptr.vmem [resolvable:$true] %s205
          %211 = dma.hbm_to_vmem [thread:$0]  %s3, 1024, %s206, [#allocation7], 64, 64, 4
        $region24: #{tpu_custom_call.1} parent=11 // pred_fallthru
          _
        // Predicated region
        $region25: #{tpu_custom_call.1} parent=11 // pred_check
          %p212 = pneg %p142
        $region26: #{tpu_custom_call.1} parent=11 // pred_check_branch
          %214 = sbr.rel (%p212) target = $region28
        $region27: #{tpu_custom_call.1} parent=11 // pred_region
          _
        $region28: #{tpu_custom_call.1} parent=11 // pred_fallthru
          _
      $region12: #{tpu_custom_call.1} parent=5 // pred_fallthru
        _
      %p215 = scmp.lt.s32.totalorder %s18, 8
      // Predicated region
      $region29: #{tpu_custom_call.1} parent=5 // pred_check
        %p216 = pneg %p215
      $region30: #{tpu_custom_call.1} parent=5 // pred_check_branch
        %218 = sbr.rel (%p216) target = $region32
      $region31: #{tpu_custom_call.1} parent=5 // pred_region
        // Predicated region
        $region33: #{tpu_custom_call.1} parent=31 // pred_check
          %p219 = pneg %p52
        $region34: #{tpu_custom_call.1} parent=31 // pred_check_branch
          %221 = sbr.rel (%p219) target = $region36
        $region35: #{tpu_custom_call.1} parent=31 // pred_region
          #allocation11 [shape = 'u32[6]{0}', space=smem, size = 0x18, scoped, tag = 'DMA stride descriptor']
          %s222 = sand.u32 %s42, 1
          %s223 = scalar_lea.sflag [#allocation4], %s222
          %s224 = sand.u32 %s42, 1
          %s225 = smul.addr %s224, 64
          %s226 = scalar_lea.vmem [#allocation3], %s225
          %s227 = smul.u32 8, %s25
          %s228 = smul.u32 2, %s26
          %s230 = ssub.s32 1024, 1024
          %231 = vsyncadd %s223, %s230
          %s232 = smul.addr %s227, 8
          %s233 = sadd.s32 %s228, %s232
          %s234 = smul.addr %s233, 64
          %s235 = scalar_lea.hbm %s0, %s234
          %s237 = sshll.u32 1, 14
          %s238 = sxor.u32 4294967295, %s237
          %s240 = sld [smem:[#allocation0]]
          %s241 = sadd.s32 2, %s240
          %s243 = sshll.u32 7, 26
          %s244 = sxor.u32 4294967295, %s243
          %s245 = sand.u32 0, %s244
          %s246 = sshll.u32 %s241, 26
          %s247 = sor.u32 %s245, %s246
          %s248 = sshll.u32 %s226, 4
          %s249 = int_to_ptr.vmem [resolvable:$true] %s248
          %255 = sst [smem:[#allocation11]] 512
          %s256 = scalar_lea.smem [#allocation11], 1
          %257 = sst [smem:[%s256]] 128
          %s258 = scalar_lea.smem [#allocation11], 2
          %259 = sst [smem:[%s258]] 2
          %s260 = scalar_lea.smem [#allocation11], 3
          %261 = sst [smem:[%s260]] 64
          %s262 = scalar_lea.smem [#allocation11], 4
          %263 = sst [smem:[%s262]] 64
          %s264 = scalar_lea.smem [#allocation11], 5
          %265 = sst [smem:[%s264]] 4
          %267 = dma.general %s235, 1024, %s249, %s223, [#allocation10], [#allocation11], %s247, 0
        $region36: #{tpu_custom_call.1} parent=31 // pred_fallthru
          _
      $region32: #{tpu_custom_call.1} parent=5 // pred_fallthru
        _
      %p268 = scmp.le.s32.totalorder 1, %s18
      %p269 = scmp.lt.s32.totalorder %s18, 9
      %p270 = pnand %p268, %p269
      %p271 = pneg %p270
      // Predicated region
      $region37: #{tpu_custom_call.1} parent=5 // pred_check
        _
      $region38: #{tpu_custom_call.1} parent=5 // pred_check_branch
        %273 = sbr.rel (%p270) target = $region40
      $region39: #{tpu_custom_call.1} parent=5 // pred_region
        %s274 = ssub.s32 %s18, 1
        %s275 = sand.u32 %s45, 1
        %s276 = scalar_lea.sflag [#allocation4], %s275
        %s277 = sand.u32 %s45, 1
        %s278 = smul.addr %s277, 64
        %s279 = scalar_lea.vmem [#allocation3], %s278
        // Predicated region
        $region41: #{tpu_custom_call.1} parent=39 // pred_check
          %p280 = pneg %p58
        $region42: #{tpu_custom_call.1} parent=39 // pred_check_branch
          %282 = sbr.rel (%p280) target = $region44
        $region43: #{tpu_custom_call.1} parent=39 // pred_region
          %283 = dma.done %s276, 1024
        $region44: #{tpu_custom_call.1} parent=39 // pred_fallthru
          _
        // Predicated region
        $region45: #{tpu_custom_call.1} parent=39 // pred_check
          %p284 = pneg %p79
        $region46: #{tpu_custom_call.1} parent=39 // pred_check_branch
          %286 = sbr.rel (%p284) target = $region48
        $region47: #{tpu_custom_call.1} parent=39 // pred_region
          %287 = dma.done [#allocation7], 1024
        $region48: #{tpu_custom_call.1} parent=39 // pred_fallthru
          _
        // Predicated region
        $region49: #{tpu_custom_call.1} parent=39 // pred_check
          %p288 = pneg %p121
        $region50: #{tpu_custom_call.1} parent=39 // pred_check_branch
          %290 = sbr.rel (%p288) target = $region52
        $region51: #{tpu_custom_call.1} parent=39 // pred_region
          %291 = dma.done [#allocation7], 1024
        $region52: #{tpu_custom_call.1} parent=39 // pred_fallthru
          _
        %s292 = sand.u32 %s45, 1
        %s293 = scalar_lea.sflag [#allocation4], %s292
        %s294 = sand.u32 %s45, 1
        %s295 = smul.addr %s294, 64
        %s296 = scalar_lea.vmem [#allocation3], %s295
        %p297 = pneg %p58
        %p298 = pneg %p55
        %p299 = pneg %p79
        %p300 = pneg %p76
        %p301 = pneg %p100
        %p302 = pneg %p97
        %p303 = pneg %p121
        %p304 = pneg %p118
        %p305 = pneg %p142
        %p306 = pneg %p139
        %p307 = pneg %p168
        %p308 = pneg %p165
        %s309 = sand.u32 %s155, 1
        %s310 = scalar_lea.sflag [#allocation5], %s309
        %s311 = sand.u32 %s155, 1
        %s312 = smul.addr %s311, 8
        %s313 = scalar_lea.vmem [#allocation9], %s312
        %s314 = smul.u32 8, %s27
        %s315 = smul.u32 2, %s28
        %p317 = scmp.eq.s32.totalorder %s28, 0
        // Predicated region
        $region53: #{tpu_custom_call.1} parent=39 // pred_check
          %p318 = pneg %p317
        $region54: #{tpu_custom_call.1} parent=39 // pred_check_branch
          %320 = sbr.rel (%p318) target = $region56
        $region55: #{tpu_custom_call.1} parent=39 // pred_region
          %321 = vst [vmem:[#allocation2] sm:$0xff] 0.0
        $region56: #{tpu_custom_call.1} parent=39 // pred_fallthru
          _
        %v322 = vld [vmem:[#allocation2] sm:$0xff]
        %v323 = vld [vmem:[%s279] sm:$0xf]
        %v324 = vld [vmem:[%s279 + $0x4] sm:$0xf]
        %v325 = vld [vmem:[%s279 + $0x8] sm:$0xf]
        %v326 = vld [vmem:[%s279 + $0xc] sm:$0xf]
        %v327 = vld [vmem:[%s279 + $0x10] sm:$0xf]
        %v328 = vld [vmem:[%s279 + $0x14] sm:$0xf]
        %v329 = vld [vmem:[%s279 + $0x18] sm:$0xf]
        %v330 = vld [vmem:[%s279 + $0x1c] sm:$0xf]
        %v331 = vld [vmem:[%s279 + $0x20] sm:$0xf]
        %v332 = vld [vmem:[%s279 + $0x24] sm:$0xf]
        %v333 = vld [vmem:[%s279 + $0x28] sm:$0xf]
        %v334 = vld [vmem:[%s279 + $0x2c] sm:$0xf]
        %v335 = vld [vmem:[%s279 + $0x30] sm:$0xf]
        %v336 = vld [vmem:[%s279 + $0x34] sm:$0xf]
        %v337 = vld [vmem:[%s279 + $0x38] sm:$0xf]
        %v338 = vld [vmem:[%s279 + $0x3c] sm:$0xf]
        %v339 = vunpack.c.l.bf16 %v323
        %v340 = vunpack.c.l.bf16 %v324
        %v341 = vunpack.c.l.bf16 %v325
        %v342 = vunpack.c.l.bf16 %v326
        %v343 = vunpack.c.l.bf16 %v327
        %v344 = vunpack.c.l.bf16 %v328
        %v345 = vunpack.c.l.bf16 %v329
        %v346 = vunpack.c.l.bf16 %v330
        %v347 = vunpack.c.l.bf16 %v331
        %v348 = vunpack.c.l.bf16 %v332
        %v349 = vunpack.c.l.bf16 %v333
        %v350 = vunpack.c.l.bf16 %v334
        %v351 = vunpack.c.l.bf16 %v335
        %v352 = vunpack.c.l.bf16 %v336
        %v353 = vunpack.c.l.bf16 %v337
        %v354 = vunpack.c.l.bf16 %v338
        %v355 = vadd.f32 %v339, %v340
        %v356 = vrot.slane %v355, 4
        %v357 = vadd.f32 %v355, %v356
        %v358 = vrot.slane %v357, 2
        %v359 = vadd.f32 %v357, %v358
        %v360 = vrot.slane %v359, 1
        %v361 = vadd.f32 %v359, %v360
        %v362 = vadd.f32 %v341, %v342
        %v363 = vrot.slane %v362, 4
        %v364 = vadd.f32 %v362, %v363
        %v365 = vrot.slane %v364, 2
        %v366 = vadd.f32 %v364, %v365
        %v367 = vrot.slane %v366, 1
        %v368 = vadd.f32 %v366, %v367
        %v369 = vadd.f32 %v343, %v344
        %v370 = vrot.slane %v369, 4
        %v371 = vadd.f32 %v369, %v370
        %v372 = vrot.slane %v371, 2
        %v373 = vadd.f32 %v371, %v372
        %v374 = vrot.slane %v373, 1
        %v375 = vadd.f32 %v373, %v374
        %v376 = vadd.f32 %v345, %v346
        %v377 = vrot.slane %v376, 4
        %v378 = vadd.f32 %v376, %v377
        %v379 = vrot.slane %v378, 2
        %v380 = vadd.f32 %v378, %v379
        %v381 = vrot.slane %v380, 1
        %v382 = vadd.f32 %v380, %v381
        %v383 = vadd.f32 %v347, %v348
        %v384 = vrot.slane %v383, 4
        %v385 = vadd.f32 %v383, %v384
        %v386 = vrot.slane %v385, 2
        %v387 = vadd.f32 %v385, %v386
        %v388 = vrot.slane %v387, 1
        %v389 = vadd.f32 %v387, %v388
        %v390 = vadd.f32 %v349, %v350
        %v391 = vrot.slane %v390, 4
        %v392 = vadd.f32 %v390, %v391
        %v393 = vrot.slane %v392, 2
        %v394 = vadd.f32 %v392, %v393
        %v395 = vrot.slane %v394, 1
        %v396 = vadd.f32 %v394, %v395
        %v397 = vadd.f32 %v351, %v352
        %v398 = vrot.slane %v397, 4
        %v399 = vadd.f32 %v397, %v398
        %v400 = vrot.slane %v399, 2
        %v401 = vadd.f32 %v399, %v400
        %v402 = vrot.slane %v401, 1
        %v403 = vadd.f32 %v401, %v402
        %v404 = vadd.f32 %v353, %v354
        %v405 = vrot.slane %v404, 4
        %v406 = vadd.f32 %v404, %v405
        %v407 = vrot.slane %v406, 2
        %v408 = vadd.f32 %v406, %v407
        %v409 = vrot.slane %v408, 1
        %v410 = vadd.f32 %v408, %v409
        %vm419 = vcmask 1041409
        %v420 = vsel %vm419, %v368, %v361
        %vm421 = vcmask 1042434
        %v422 = vsel %vm421, %v375, %v420
        %vm423 = vcmask 1043459
        %v424 = vsel %vm423, %v382, %v422
        %vm425 = vcmask 1044484
        %v426 = vsel %vm425, %v389, %v424
        %vm427 = vcmask 1045509
        %v428 = vsel %vm427, %v396, %v426
        %vm429 = vcmask 1046534
        %v430 = vsel %vm429, %v403, %v428
        %vm431 = vcmask 1047559
        %v432 = vsel %vm431, %v410, %v430
        %v434 = vadd.f32 %v322, %v432
        %435 = vst [vmem:[#allocation2] sm:$0xff] %v434
        %p436 = scmp.eq.s32.totalorder %s28, 3
        // Predicated region
        $region57: #{tpu_custom_call.1} parent=39 // pred_check
          %p437 = pneg %p436
        $region58: #{tpu_custom_call.1} parent=39 // pred_check_branch
          %439 = sbr.rel (%p437) target = $region60
        $region59: #{tpu_custom_call.1} parent=39 // pred_region
          %v440 = vld [vmem:[#allocation2] sm:$0xff]
          %v441 = vmul.f32 %v440, 0.015625
          %v442 = vpack.c.bf16 %v441, %v441
          %v443 = vld [vmem:[#allocation6] sm:$0xf]
          %v444 = vld [vmem:[#allocation6 + $0x4] sm:$0xf]
          %v445 = vld [vmem:[#allocation6 + $0x8] sm:$0xf]
          %v446 = vld [vmem:[#allocation6 + $0xc] sm:$0xf]
          %v447 = vld [vmem:[#allocation6 + $0x10] sm:$0xf]
          %v448 = vld [vmem:[#allocation6 + $0x14] sm:$0xf]
          %v449 = vld [vmem:[#allocation6 + $0x18] sm:$0xf]
          %v450 = vld [vmem:[#allocation6 + $0x1c] sm:$0xf]
          %v451 = vld [vmem:[#allocation6 + $0x20] sm:$0xf]
          %v452 = vld [vmem:[#allocation6 + $0x24] sm:$0xf]
          %v453 = vld [vmem:[#allocation6 + $0x28] sm:$0xf]
          %v454 = vld [vmem:[#allocation6 + $0x2c] sm:$0xf]
          %v455 = vld [vmem:[#allocation6 + $0x30] sm:$0xf]
          %v456 = vld [vmem:[#allocation6 + $0x34] sm:$0xf]
          %v457 = vld [vmem:[#allocation6 + $0x38] sm:$0xf]
          %v458 = vld [vmem:[#allocation6 + $0x3c] sm:$0xf]
          %v459 = vld [vmem:[%s2] sm:$0x1]
          %v461 = vlaneseq
          %v462 = vshrl.u32 %v461, 7
          %v463 = vsub.s32 0, %v462
          %v464 = vrot.slane %v459, %v463
          %v482 = vunpack.c.l.b16 %v443
          %v483 = vunpack.c.l.b16 %v444
          %v484 = vunpack.c.l.b16 %v445
          %v485 = vunpack.c.l.b16 %v446
          %v486 = vunpack.c.l.b16 %v447
          %v487 = vunpack.c.l.b16 %v448
          %v488 = vunpack.c.l.b16 %v449
          %v489 = vunpack.c.l.b16 %v450
          %v490 = vunpack.c.l.b16 %v451
          %v491 = vunpack.c.l.b16 %v452
          %v492 = vunpack.c.l.b16 %v453
          %v493 = vunpack.c.l.b16 %v454
          %v494 = vunpack.c.l.b16 %v455
          %v495 = vunpack.c.l.b16 %v456
          %v496 = vunpack.c.l.b16 %v457
          %v497 = vunpack.c.l.b16 %v458
          %v498 = vpack.c.b16 %v483, %v482
          %v499 = vpack.c.b16 %v485, %v484
          %v500 = vpack.c.b16 %v487, %v486
          %v501 = vpack.c.b16 %v489, %v488
          %v502 = vpack.c.b16 %v491, %v490
          %v503 = vpack.c.b16 %v493, %v492
          %v504 = vpack.c.b16 %v495, %v494
          %v505 = vpack.c.b16 %v497, %v496
          %514 = vmatprep.subr.bf16.mxu0 0
          %515 = vmatpush1.bf16.msra.mxu0 %v498
          %516 = vmatprep.subr.bf16.mxu0 0
          %517 = vmatpush1.bf16.msra.mxu0 %v499
          %518 = vmatprep.subr.bf16.mxu0 0
          %519 = vmatpush1.bf16.msra.mxu0 %v500
          %520 = vmatprep.subr.bf16.mxu0 0
          %521 = vmatpush1.bf16.msra.mxu0 %v501
          %522 = vmatprep.subr.bf16.mxu0 0
          %523 = vmatpush1.bf16.msra.mxu0 %v502
          %524 = vmatprep.subr.bf16.mxu0 0
          %525 = vmatpush1.bf16.msra.mxu0 %v503
          %526 = vmatprep.subr.bf16.mxu0 0
          %527 = vmatpush1.bf16.msra.mxu0 %v504
          %528 = vmatprep.subr.bf16.mxu0 0
          %529 = vmatpush1.bf16.msra.mxu0 %v505
          %530 = vmatprep.subr.bf16.mxu0 0
          %531 = vmatpush1.bf16.msra.mxu0 0
          %532 = vmatprep.subr.bf16.mxu0 0
          %533 = vmatpush1.bf16.msra.mxu0 0
          %534 = vmatprep.subr.bf16.mxu0 0
          %535 = vmatpush1.bf16.msra.mxu0 0
          %536 = vmatprep.subr.bf16.mxu0 0
          %537 = vmatpush1.bf16.msra.mxu0 0
          %538 = vmatprep.subr.bf16.mxu0 0
          %539 = vmatpush1.bf16.msra.mxu0 0
          %540 = vmatprep.subr.bf16.mxu0 0
          %541 = vmatpush1.bf16.msra.mxu0 0
          %542 = vmatprep.subr.bf16.mxu0 0
          %543 = vmatpush1.bf16.msra.mxu0 0
          %544 = vmatprep.subr.bf16.mxu0 0
          %545 = vmatpush1.bf16.msra.mxu0 0
          %546 = vmatprep.mubr.bf16.mxu0 0
          %547 = vmatmul.mubr.bf16.gmra.mrb[0].mxu0 %v442
          %v548 = vpop.f32.mrb[0].mxu0
          %v549 = vadd.f32 %v464, %v548
          %v550 = vpop.f32.mrb[0].mxu0
          %v551 = vpop.f32.mrb[0].mxu0
          %v552 = vpop.f32.mrb[0].mxu0
          %553 = vdwg.mxu0
          %v554 = vpack.c.bf16 %v549, %v549
          %v555 = vld [vmem:[#allocation8] sm:$0xf]
          %v556 = vld [vmem:[#allocation8 + $0x4] sm:$0xf]
          %v557 = vld [vmem:[#allocation8 + $0x8] sm:$0xf]
          %v558 = vld [vmem:[#allocation8 + $0xc] sm:$0xf]
          %v559 = vld [vmem:[#allocation8 + $0x10] sm:$0xf]
          %v560 = vld [vmem:[#allocation8 + $0x14] sm:$0xf]
          %v561 = vld [vmem:[#allocation8 + $0x18] sm:$0xf]
          %v562 = vld [vmem:[#allocation8 + $0x1c] sm:$0xf]
          %v563 = vld [vmem:[#allocation8 + $0x20] sm:$0xf]
          %v564 = vld [vmem:[#allocation8 + $0x24] sm:$0xf]
          %v565 = vld [vmem:[#allocation8 + $0x28] sm:$0xf]
          %v566 = vld [vmem:[#allocation8 + $0x2c] sm:$0xf]
          %v567 = vld [vmem:[#allocation8 + $0x30] sm:$0xf]
          %v568 = vld [vmem:[#allocation8 + $0x34] sm:$0xf]
          %v569 = vld [vmem:[#allocation8 + $0x38] sm:$0xf]
          %v570 = vld [vmem:[#allocation8 + $0x3c] sm:$0xf]
          %v571 = vld [vmem:[%s4] sm:$0x1]
          %v573 = vlaneseq
          %v574 = vshrl.u32 %v573, 7
          %v575 = vsub.s32 0, %v574
          %v576 = vrot.slane %v571, %v575
          %v594 = vunpack.c.l.b16 %v555
          %v595 = vunpack.c.l.b16 %v556
          %v596 = vunpack.c.l.b16 %v557
          %v597 = vunpack.c.l.b16 %v558
          %v598 = vunpack.c.l.b16 %v559
          %v599 = vunpack.c.l.b16 %v560
          %v600 = vunpack.c.l.b16 %v561
          %v601 = vunpack.c.l.b16 %v562
          %v602 = vunpack.c.l.b16 %v563
          %v603 = vunpack.c.l.b16 %v564
          %v604 = vunpack.c.l.b16 %v565
          %v605 = vunpack.c.l.b16 %v566
          %v606 = vunpack.c.l.b16 %v567
          %v607 = vunpack.c.l.b16 %v568
          %v608 = vunpack.c.l.b16 %v569
          %v609 = vunpack.c.l.b16 %v570
          %v610 = vpack.c.b16 %v595, %v594
          %v611 = vpack.c.b16 %v597, %v596
          %v612 = vpack.c.b16 %v599, %v598
          %v613 = vpack.c.b16 %v601, %v600
          %v614 = vpack.c.b16 %v603, %v602
          %v615 = vpack.c.b16 %v605, %v604
          %v616 = vpack.c.b16 %v607, %v606
          %v617 = vpack.c.b16 %v609, %v608
          %626 = vmatprep.subr.bf16.mxu0 0
          %627 = vmatpush1.bf16.msra.mxu0 %v610
          %628 = vmatprep.subr.bf16.mxu0 0
          %629 = vmatpush1.bf16.msra.mxu0 %v611
          %630 = vmatprep.subr.bf16.mxu0 0
          %631 = vmatpush1.bf16.msra.mxu0 %v612
          %632 = vmatprep.subr.bf16.mxu0 0
          %633 = vmatpush1.bf16.msra.mxu0 %v613
          %634 = vmatprep.subr.bf16.mxu0 0
          %635 = vmatpush1.bf16.msra.mxu0 %v614
          %636 = vmatprep.subr.bf16.mxu0 0
          %637 = vmatpush1.bf16.msra.mxu0 %v615
          %638 = vmatprep.subr.bf16.mxu0 0
          %639 = vmatpush1.bf16.msra.mxu0 %v616
          %640 = vmatprep.subr.bf16.mxu0 0
          %641 = vmatpush1.bf16.msra.mxu0 %v617
          %642 = vmatprep.subr.bf16.mxu0 0
          %643 = vmatpush1.bf16.msra.mxu0 0
          %644 = vmatprep.subr.bf16.mxu0 0
          %645 = vmatpush1.bf16.msra.mxu0 0
          %646 = vmatprep.subr.bf16.mxu0 0
          %647 = vmatpush1.bf16.msra.mxu0 0
          %648 = vmatprep.subr.bf16.mxu0 0
          %649 = vmatpush1.bf16.msra.mxu0 0
          %650 = vmatprep.subr.bf16.mxu0 0
          %651 = vmatpush1.bf16.msra.mxu0 0
          %652 = vmatprep.subr.bf16.mxu0 0
          %653 = vmatpush1.bf16.msra.mxu0 0
          %654 = vmatprep.subr.bf16.mxu0 0
          %655 = vmatpush1.bf16.msra.mxu0 0
          %656 = vmatprep.subr.bf16.mxu0 0
          %657 = vmatpush1.bf16.msra.mxu0 0
          %658 = vmatprep.mubr.bf16.mxu0 0
          %659 = vmatmul.mubr.bf16.gmra.mrb[0].mxu0 %v554
          %v660 = vpop.f32.mrb[0].mxu0
          %v661 = vadd.f32 %v576, %v660
          %v662 = vpop.f32.mrb[0].mxu0
          %v663 = vpop.f32.mrb[0].mxu0
          %v664 = vpop.f32.mrb[0].mxu0
          %665 = vdwg.mxu0
          %666 = vst [vmem:[%s313] sm:$0xff] %v661
        $region60: #{tpu_custom_call.1} parent=39 // pred_fallthru
          _
        %s667 = sand.u32 %s155, 1
        %s668 = scalar_lea.sflag [#allocation5], %s667
        %s669 = sand.u32 %s155, 1
        %s670 = smul.addr %s669, 8
        %s671 = scalar_lea.vmem [#allocation9], %s670
        // Predicated region
        $region61: #{tpu_custom_call.1} parent=39 // pred_check
          %p672 = pneg %p165
        $region62: #{tpu_custom_call.1} parent=39 // pred_check_branch
          %674 = sbr.rel (%p672) target = $region64
        $region63: #{tpu_custom_call.1} parent=39 // pred_region
          %s676 = ssub.s32 128, 128
          %677 = vsyncadd %s668, %s676
          %s678 = smul.addr %s27, 128
          %s679 = scalar_lea.hbm %s5, %s678
          %s681 = sshll.u32 %s671, 4
          %s682 = int_to_ptr.vmem [resolvable:$true] %s681
          %684 = dma.vmem_to_hbm [thread:$0]  %s682, 128, %s679, %s668
        $region64: #{tpu_custom_call.1} parent=39 // pred_fallthru
          _
      $region40: #{tpu_custom_call.1} parent=5 // pred_fallthru
        _
      %p685 = scmp.le.s32.totalorder 2, %s18
      // Predicated region
      $region65: #{tpu_custom_call.1} parent=5 // pred_check
        %p686 = pneg %p685
      $region66: #{tpu_custom_call.1} parent=5 // pred_check_branch
        %688 = sbr.rel (%p686) target = $region68
      $region67: #{tpu_custom_call.1} parent=5 // pred_region
        %s689 = ssub.s32 %s18, 2
        // Predicated region
        $region69: #{tpu_custom_call.1} parent=67 // pred_check
          %p690 = pneg %p171
        $region70: #{tpu_custom_call.1} parent=67 // pred_check_branch
          %692 = sbr.rel (%p690) target = $region72
        $region71: #{tpu_custom_call.1} parent=67 // pred_region
          %s693 = sand.u32 %s156, 1
          %s694 = scalar_lea.sflag [#allocation5], %s693
          %s695 = sand.u32 %s156, 1
          %s696 = smul.addr %s695, 8
          %s697 = scalar_lea.vmem [#allocation9], %s696
          %698 = dma.done %s694, 128
        $region72: #{tpu_custom_call.1} parent=67 // pred_fallthru
          _
      $region68: #{tpu_custom_call.1} parent=5 // pred_fallthru
        _
    $region6: #{tpu_custom_call.1} parent=1 // loop_footer
      %s22 = sadd.s32 1, %s18
    $region7: #{tpu_custom_call.1} parent=1 // loop_footer_branch
      %17 = sbr.rel target = $region3
    $region8: #{tpu_custom_call.1} parent=1 // loop_exit
      _
    %699 = vsyncpa [#allocation4], 1
    %s700 = scalar_lea.sflag [#allocation4], 1
    %701 = vsyncpa %s700, 1
    %702 = vsyncpa [#allocation7], 1
    %703 = vsyncpa [#allocation5], 1
    %s704 = scalar_lea.sflag [#allocation5], 1
    %705 = vsyncpa %s704, 1

</llo_original>
